<compile_context>
chip_gen: v5e
topology: v5e:2x2
jax: 0.10.0
libtpu: 0.0.40
codegen_flags: <defaults>
</compile_context>

<pallas_src>
import functools

import jax
import jax.numpy as jnp
from jax.experimental import pallas as pl
from jax.experimental.pallas import tpu as pltpu


def _round_up(a: int, b: int) -> int:
    return (a + b - 1) // b * b


_LANE = 128
_MAX_SINGLE_K = 2048   # keep the whole reduction in one block up to this K
_TK_MULTI = 1024       # K tile when the reduction is split
_TN = 512              # output-column tile (capped at the padded fused width)


def _vmem_cap_bytes() -> int:
    """Physical VMEM per TensorCore, with a conservative fallback."""
    try:
        info = pltpu.get_tpu_info()
        cap = getattr(info, "vmem_capacity_bytes", None)
        if cap:
            return int(cap)
    except Exception:
        pass
    return 64 * 1024 * 1024  # v7x-sized fallback (safe on all generations)


# ----------------------------------------------------------------------------
# Kernels
# ----------------------------------------------------------------------------
def _qkv_kernel_single_k(x_ref, w_ref, b_ref, o_ref):
    """Whole reduction in one block: direct matmul + bias, no scratch pass."""
    o_ref[...] = (
        jnp.dot(x_ref[...], w_ref[...], preferred_element_type=jnp.float32)
        + b_ref[...]
    ).astype(o_ref.dtype)


def _qkv_kernel_multi_k(x_ref, w_ref, b_ref, o_ref, acc_ref):
    """Split reduction: f32 accumulator, bias-add + downcast only at k==last."""
    k = pl.program_id(2)

    @pl.when(k == 0)
    def _():
        acc_ref[...] = jnp.zeros_like(acc_ref)

    acc_ref[...] += jnp.dot(
        x_ref[...], w_ref[...], preferred_element_type=jnp.float32
    )

    @pl.when(k == pl.num_programs(2) - 1)
    def _():
        o_ref[...] = (acc_ref[...] + b_ref[...]).astype(o_ref.dtype)


# ----------------------------------------------------------------------------
# One-time weight fusion (hoisted out of the per-call hot path)
# ----------------------------------------------------------------------------
def prepare_qkv_weights(wq, bq, wk, bk, wv, bv, compute_dtype=None):
    """Fuse the three (d, K) torch-layout projections into one lane-dense slab.

    Returns (w_fused (K_pad, N_pad), b_fused (1, N_pad), n_valid).
    Call once at weight-load time; the per-call forward then pays zero
    transpose/concat/pad cost.
    """
    K = wq.shape[1]
    N = 3 * wq.shape[0]

    w = jnp.concatenate([wq.T, wk.T, wv.T], axis=1)           # (K, N)
    b = jnp.concatenate([bq, bk, bv], axis=0).reshape(1, N)   # (1, N)
    if compute_dtype is not None:
        w = w.astype(compute_dtype)
        b = b.astype(compute_dtype)

    # Fused output axis: lane-dense (multiple of 128) and, when it will be
    # tiled, a multiple of the column tile TN.
    N_pad = _round_up(N, _LANE)
    if N_pad > _TN:
        N_pad = _round_up(N_pad, _TN)
    # K is padded only when the reduction is split into multiple blocks.
    K_pad = K if K <= _MAX_SINGLE_K else _round_up(K, _TK_MULTI)

    if (K_pad, N_pad) != (K, N):
        w = jnp.pad(w, ((0, K_pad - K), (0, N_pad - N)))
    if N_pad != N:
        b = jnp.pad(b, ((0, 0), (0, N_pad - N)))
    return w, b, N


# ----------------------------------------------------------------------------
# Forward
# ----------------------------------------------------------------------------
@functools.partial(jax.jit, static_argnames=("n_valid",))
def qkv_forward_fused(x, w_fused, b_fused, n_valid):
    """x: (..., K); w_fused: (K_pad, N_pad); b_fused: (1, N_pad)."""
    lead = x.shape[:-1]
    K = x.shape[-1]
    out_dtype = x.dtype
    K_pad, N_pad = w_fused.shape

    M = 1
    for s in lead:
        M *= s

    # Optional reduced-precision compute path (weights prepared in bf16).
    if w_fused.dtype != x.dtype:
        x = x.astype(w_fused.dtype)

    ib = jnp.dtype(x.dtype).itemsize
    ob = jnp.dtype(out_dtype).itemsize
    sub_pack = max(8, 32 // ib)          # packed sublanes per vreg (dtype-aware)

    multi_k = K_pad > _MAX_SINGLE_K
    TK = _TK_MULTI if multi_k else K_pad
    TN = min(_TN, N_pad)

    # Row tile: large for prefill/training M (weight slab is re-streamed once
    # per M tile, so bigger TM => less weight HBM traffic); dtype-aligned for
    # small decode batches.
    if M >= 1024 and multi_k:
        TM = 1024
    elif M >= 512:
        TM = 512
    else:
        TM = _round_up(max(M, 1), sub_pack)
    M_pad = _round_up(M, TM)

    x2 = x.reshape(M, K)
    if M_pad != M or K_pad != K:
        x2 = jnp.pad(x2, ((0, M_pad - M), (0, K_pad - K)))

    gm, gn, gk = M_pad // TM, N_pad // TN, K_pad // TK

    # VMEM budget (double-buffered tiles + accumulator), clamped per
    # generation (v7x: 64 MiB physical => <=56 MiB requested).
    vmem_est = (
        2 * TM * TK * ib                       # x tile (double-buffered)
        + 2 * TK * TN * ib                     # weight tile
        + 2 * TN * ib                          # bias row
        + 2 * TM * TN * ob                     # output tile
        + (TM * TN * 4 if multi_k else 0)      # f32 accumulator scratch
    )
    cap = _vmem_cap_bytes()
    vmem_limit = min(cap * 7 // 8, max(32 * 1024 * 1024, int(vmem_est * 2)))

    cost = pl.CostEstimate(
        flops=2 * M * K * n_valid,
        transcendentals=0,
        bytes_accessed=(
            M_pad * K_pad * ib              # activations
            + gm * K_pad * N_pad * ib       # weights, re-streamed once per M tile
            + N_pad * ib                    # bias
            + M_pad * N_pad * ob            # output
        ),
    )

    if multi_k:
        grid_spec = pltpu.PrefetchScalarGridSpec(
            num_scalar_prefetch=0,
            grid=(gm, gn, gk),
            in_specs=[
                pl.BlockSpec((TM, TK), lambda i, j, k: (i, k)),   # x tile
                pl.BlockSpec((TK, TN), lambda i, j, k: (k, j)),   # fused W tile
                pl.BlockSpec((1, TN), lambda i, j, k: (0, j)),    # fused bias
            ],
            out_specs=pl.BlockSpec((TM, TN), lambda i, j, k: (i, j)),
            scratch_shapes=[pltpu.VMEM((TM, TN), jnp.float32)],
        )
        kernel = _qkv_kernel_multi_k
        dims = ("parallel", "parallel", "arbitrary")
    else:
        grid_spec = pltpu.PrefetchScalarGridSpec(
            num_scalar_prefetch=0,
            grid=(gm, gn),
            in_specs=[
                pl.BlockSpec((TM, TK), lambda i, j: (i, 0)),      # x tile
                pl.BlockSpec((TK, TN), lambda i, j: (0, j)),      # fused W tile
                pl.BlockSpec((1, TN), lambda i, j: (0, j)),       # fused bias
            ],
            out_specs=pl.BlockSpec((TM, TN), lambda i, j: (i, j)),
            scratch_shapes=[],
        )
        kernel = _qkv_kernel_single_k
        dims = ("parallel", "parallel")

    out = pl.pallas_call(
        kernel,
        out_shape=jax.ShapeDtypeStruct((M_pad, N_pad), out_dtype),
        grid_spec=grid_spec,
        compiler_params=pltpu.CompilerParams(
            dimension_semantics=dims,
            vmem_limit_bytes=vmem_limit,
        ),
        cost_estimate=cost,
    )(x2, w_fused, b_fused)

    # Strip padding, restore leading dims (== torch.concat([q,k,v], dim=-1)).
    return out[:M, :n_valid].reshape(*lead, n_valid)


def qkv_forward(x, wq, bq, wk, bk, wv, bv, compute_dtype=None):
    """Convenience path: fuse weights (once) then run the Pallas kernel."""
    w_fused, b_fused, n_valid = prepare_qkv_weights(
        wq, bq, wk, bk, wv, bv, compute_dtype
    )
    return qkv_forward_fused(x, w_fused, b_fused, n_valid)


if __name__ == "__main__":
    # small shapes: batch=2, seq=8, in_features=32, out_features=48 (48//3=16)
    B, S, in_features, out_features = 2, 8, 32, 48
    d = out_features // 3

    key = jax.random.PRNGKey(0)
    kx, kwq, kbq, kwk, kbk, kwv, kbv = jax.random.split(key, 7)

    # deterministic init mimicking nn.Linear's uniform(-1/sqrt(in), 1/sqrt(in))
    bound = 1.0 / (in_features ** 0.5)
    x = jax.random.normal(kx, (B, S, in_features), dtype=jnp.float32)
    wq = jax.random.uniform(kwq, (d, in_features), jnp.float32, -bound, bound)
    bq = jax.random.uniform(kbq, (d,), jnp.float32, -bound, bound)
    wk = jax.random.uniform(kwk, (d, in_features), jnp.float32, -bound, bound)
    bk = jax.random.uniform(kbk, (d,), jnp.float32, -bound, bound)
    wv = jax.random.uniform(kwv, (d, in_features), jnp.float32, -bound, bound)
    bv = jax.random.uniform(kbv, (d,), jnp.float32, -bound, bound)

    # Weight fusion hoisted out of the hot path (done once, reused per call).
    w_fused, b_fused, n_valid = prepare_qkv_weights(wq, bq, wk, bk, wv, bv)
    w_fused = jax.block_until_ready(w_fused)
    b_fused = jax.block_until_ready(b_fused)

    out = qkv_forward_fused(x, w_fused, b_fused, n_valid)
    out = jax.block_until_ready(out)

    # reference check (plain JAX)
    ref = jnp.concatenate([x @ wq.T + bq, x @ wk.T + bk, x @ wv.T + bv], axis=-1)
    assert out.shape == (B, S, out_features), out.shape
    assert jnp.allclose(out, ref, atol=1e-5, rtol=1e-5), float(
        jnp.max(jnp.abs(out - ref))
    )

    print("KERNEL_OK")
</pallas_src>

<mosaic_0001>
module attributes {stable_mosaic.version = 11 : i64} {
  func.func @_qkv_kernel_single_k(%arg0: i32, %arg1: i32, %arg2: memref<16x32xf32, #tpu.memory_space<vmem>>, %arg3: memref<32x128xf32, #tpu.memory_space<vmem>>, %arg4: memref<1x128xf32, #tpu.memory_space<vmem>>, %arg5: memref<16x128xf32, #tpu.memory_space<vmem>>) attributes {dimension_semantics = [#tpu.dimension_semantics<parallel>, #tpu.dimension_semantics<parallel>], iteration_bounds = array<i64: 1, 1>, scalar_prefetch = 0 : i64, scratch_operands = 0 : i64, tpu.core_type = #tpu.core_type<tc>, window_params = [{transform_indices = @transform_0, window_bounds = array<i64: 16, 32>}, {transform_indices = @transform_1, window_bounds = array<i64: 32, 128>}, {transform_indices = @transform_2, window_bounds = array<i64: 1, 128>}, {transform_indices = @transform_3, window_bounds = array<i64: 16, 128>}]} {
    %c0 = arith.constant 0 : index
    %c0_0 = arith.constant 0 : index
    %0 = vector.load %arg2[%c0, %c0_0] : memref<16x32xf32, #tpu.memory_space<vmem>>, vector<16x32xf32>
    %c0_1 = arith.constant 0 : index
    %c0_2 = arith.constant 0 : index
    %1 = vector.load %arg3[%c0_1, %c0_2] : memref<32x128xf32, #tpu.memory_space<vmem>>, vector<32x128xf32>
    %cst = arith.constant dense<0.000000e+00> : vector<16x128xf32>
    %2 = tpu.matmul %0, %1, %cst {dimension_numbers = #tpu.dot_dimension_numbers<[1], [0], [0], [1], [0, 0, 1, 1], [], []>} : vector<16x32xf32>, vector<32x128xf32>, vector<16x128xf32> -> vector<16x128xf32>
    %c0_3 = arith.constant 0 : index
    %c0_4 = arith.constant 0 : index
    %3 = vector.load %arg4[%c0_3, %c0_4] : memref<1x128xf32, #tpu.memory_space<vmem>>, vector<1x128xf32>
    %4 = vector.broadcast %3 : vector<1x128xf32> to vector<16x128xf32>
    %5 = arith.addf %2, %4 : vector<16x128xf32>
    %c0_5 = arith.constant 0 : index
    %c0_6 = arith.constant 0 : index
    %6 = vector.load %arg5[%c0_5, %c0_6] : memref<16x128xf32, #tpu.memory_space<vmem>>, vector<16x128xf32>
    tpu.vector_store %arg5[%c0_5, %c0_6], %5 {strides = array<i32>} : memref<16x128xf32, #tpu.memory_space<vmem>>, vector<16x128xf32>,
    return
  }
  func.func @transform_0(%arg0: i32, %arg1: i32) -> (i32, i32) {
    %c0_i32 = arith.constant 0 : i32
    %c0_i32_0 = arith.constant 0 : i32
    return %arg0, %c0_i32 : i32, i32
  }
  func.func @transform_1(%arg0: i32, %arg1: i32) -> (i32, i32) {
    %c0_i32 = arith.constant 0 : i32
    %c0_i32_0 = arith.constant 0 : i32
    return %c0_i32, %arg1 : i32, i32
  }
  func.func @transform_2(%arg0: i32, %arg1: i32) -> (i32, i32) {
    %c0_i32 = arith.constant 0 : i32
    %c0_i32_0 = arith.constant 0 : i32
    return %c0_i32, %arg1 : i32, i32
  }
  func.func @transform_3(%arg0: i32, %arg1: i32) -> (i32, i32) {
    %c0_i32 = arith.constant 0 : i32
    return %arg0, %arg1 : i32, i32
  }
}

</mosaic_0001>

<llo_original>
// kernel: qkv_forward_fused.1
$region0: #{qkv_forward_fused.1}
  #allocation0 [shape = 'u32[]', space=smem, size = 0x4, offset = 0x4, fixed_abs, tag = 'smem constant byte address 0x4 - core index']
  #allocation1 [shape = 'u32[72,128]{1,0:T(1,128)}', space=vmem, size = 0x9000, scoped, tag = 'internal scratch']
  %s0 = inlined_call_operand.hbm [shape: f32[16,32], index: 0, kind: input, shape index: {}]
  %s1 = inlined_call_operand.hbm [shape: f32[32,128], index: 1, kind: input, shape index: {}]
  %s2 = inlined_call_operand.vmem [shape: f32[1,128], index: 2, kind: input, shape index: {}]
  %s3 = inlined_call_operand.vmem [shape: f32[16,128], index: 3, kind: output, shape index: {}]
  %s4 = sld [smem:[#allocation0]]
  $region30: #{qkv_forward_fused.1} parent=0
    _
  %s6 = ssub.s32 1, %s4
  %s7 = scalar_select 0, %s6, %s4
  $region1: #{qkv_forward_fused.1} parent=0
    #allocation2 [shape = 'u8[8192]{0}', space=vmem, size = 0x2000, scoped, tag = 'input window, operand 0, single buffered']
    #allocation3 [shape = 's32[1]{0}', space=sflag, size = 0x4, scoped, tag = 'scoped memory for qkv_forward_fused.1']
    #allocation4 [shape = 'u8[16384]{0}', space=vmem, size = 0x4000, scoped, tag = 'input window, operand 1, single buffered']
    #allocation5 [shape = 's32[1]{0}', space=sflag, size = 0x4, scoped, tag = 'scoped memory for qkv_forward_fused.1']
    %8 = vsyncpa [#allocation3], 0
    %9 = vsyncpa [#allocation5], 0
    // Predicated region
    $region2: #{qkv_forward_fused.1} parent=1 // pred_check
      _
    $region3: #{qkv_forward_fused.1} parent=1 // pred_check_branch
      %11 = sbr.rel (0) target = $region5
    $region4: #{qkv_forward_fused.1} parent=1 // pred_region
      %13 = vsyncadd [#allocation3], 0
      %s14 = sshll.u32 %s0, 4
      %s15 = int_to_ptr.hbm [resolvable:$true] %s14
      %s16 = sshll.u32 [#allocation2], 4
      %s17 = int_to_ptr.vmem [resolvable:$true] %s16
      %22 = dma.hbm_to_vmem [thread:$0]  %s15, 256, %s17, [#allocation3], 128, 128, 8
    $region5: #{qkv_forward_fused.1} parent=1 // pred_fallthru
      _
    // Predicated region
    $region6: #{qkv_forward_fused.1} parent=1 // pred_check
      _
    $region7: #{qkv_forward_fused.1} parent=1 // pred_check_branch
      %24 = sbr.rel (0) target = $region9
    $region8: #{qkv_forward_fused.1} parent=1 // pred_region
      %26 = vsyncadd [#allocation5], 0
      %s27 = sshll.u32 %s1, 4
      %s28 = int_to_ptr.hbm [resolvable:$true] %s27
      %s29 = sshll.u32 [#allocation4], 4
      %s30 = int_to_ptr.vmem [resolvable:$true] %s29
      %35 = dma.hbm_to_vmem [thread:$0]  %s28, 512, %s30, [#allocation5], 128, 128, 8
    $region9: #{qkv_forward_fused.1} parent=1 // pred_fallthru
      _
    // Predicated region
    $region10: #{qkv_forward_fused.1} parent=1 // pred_check
      _
    $region11: #{qkv_forward_fused.1} parent=1 // pred_check_branch
      %37 = sbr.rel (0) target = $region13
    $region12: #{qkv_forward_fused.1} parent=1 // pred_region
      _
    $region13: #{qkv_forward_fused.1} parent=1 // pred_fallthru
      _
    // Predicated region
    $region14: #{qkv_forward_fused.1} parent=1 // pred_check
      _
    $region15: #{qkv_forward_fused.1} parent=1 // pred_check_branch
      %39 = sbr.rel (0) target = $region17
    $region16: #{qkv_forward_fused.1} parent=1 // pred_region
      %41 = dma.done [#allocation3], 256
    $region17: #{qkv_forward_fused.1} parent=1 // pred_fallthru
      _
    // Predicated region
    $region18: #{qkv_forward_fused.1} parent=1 // pred_check
      _
    $region19: #{qkv_forward_fused.1} parent=1 // pred_check_branch
      %43 = sbr.rel (0) target = $region21
    $region20: #{qkv_forward_fused.1} parent=1 // pred_region
      %45 = dma.done [#allocation5], 512
    $region21: #{qkv_forward_fused.1} parent=1 // pred_fallthru
      _
    %v46 = vld [vmem:[#allocation2] sm:$0xff]
    %v47 = vld [vmem:[#allocation2 + $0x8] sm:$0xff]
    %v48 = vld [vmem:[#allocation4] sm:$0xff]
    %v49 = vld [vmem:[#allocation4 + $0x8] sm:$0xff]
    %v50 = vld [vmem:[#allocation4 + $0x10] sm:$0xff]
    %v51 = vld [vmem:[#allocation4 + $0x18] sm:$0xff]
    %v52 = vld [vmem:[%s2] sm:$0x1]
    %v54 = vperm.slane %v52, 0
    %vm56 = vcmask 261120
    %v58 = vsel %vm56, %v46, 0
    %v61 = vsel %vm56, %v47, 0
    %63 = vmatpush.msra.mxu0 0.0
    %64 = vmatpush.msra.mxu0 0.0
    %65 = vmatpush.msra.mxu0 0.0
    %66 = vmatpush.msra.mxu0 0.0
    %67 = vmatpush.msra.mxu0 0.0
    %68 = vmatpush.msra.mxu0 0.0
    %69 = vmatpush.msra.mxu0 0.0
    %70 = vmatpush.msra.mxu0 0.0
    %71 = vmatpush.msra.mxu0 0.0
    %72 = vmatpush.msra.mxu0 0.0
    %73 = vmatpush.msra.mxu0 0.0
    %74 = vmatpush.msra.mxu0 0.0
    %75 = vmatpush.msra.mxu0 %v51
    %76 = vmatpush.msra.mxu0 %v50
    %77 = vmatpush.msra.mxu0 %v49
    %78 = vmatpush.msra.mxu0 %v48
    %79 = vmatmul.f32.gmra.mxu0 %v58
    %v80 = vpop.f32.mrf.mxu0
    %v81 = vadd.f32 %v54, %v80
    %82 = vmatmul.f32.gmra.mxu0 %v61
    %v83 = vpop.f32.mrf.mxu0
    %v84 = vadd.f32 %v54, %v83
    %85 = vdwg.mxu0
    %86 = vst [vmem:[%s3] sm:$0xff] %v81
    %87 = vst [vmem:[%s3 + $0x8] sm:$0xff] %v84
    // Predicated region
    $region22: #{qkv_forward_fused.1} parent=1 // pred_check
      _
    $region23: #{qkv_forward_fused.1} parent=1 // pred_check_branch
      %89 = sbr.rel (0) target = $region25
    $region24: #{qkv_forward_fused.1} parent=1 // pred_region
      _
    $region25: #{qkv_forward_fused.1} parent=1 // pred_fallthru
      _
    // Predicated region
    $region26: #{qkv_forward_fused.1} parent=1 // pred_check
      _
    $region27: #{qkv_forward_fused.1} parent=1 // pred_check_branch
      %91 = sbr.rel (0) target = $region29
    $region28: #{qkv_forward_fused.1} parent=1 // pred_region
      _
    $region29: #{qkv_forward_fused.1} parent=1 // pred_fallthru
      _
    %92 = vsyncpa [#allocation3], 1
    %93 = vsyncpa [#allocation5], 1

</llo_original>
